<compile_context>
chip_gen: v7x
topology: tpu7x:2x2x1
jax: 0.10.0
libtpu: 0.0.40
codegen_flags: <defaults>
</compile_context>

<pallas_src>
import numpy as np
import jax
import jax.numpy as jnp
from jax.experimental import pallas as pl
from jax.experimental.pallas import tpu as pltpu

_INV_SQRT2 = 0.7071067811865476


def _round_up(x, m):
    return (x + m - 1) // m * m


def _cdiv(a, b):
    return -(-a // b)


def _pad2(a, rows, cols):
    return jnp.pad(a, ((0, rows - a.shape[0]), (0, cols - a.shape[1])))


def _erf_f32(z):
    # Abramowitz & Stegun 7.1.26 (max abs err ~1.5e-7).  exp + approx reciprocal
    # go to the EUP slot; the polynomial is VPU mul/add that overlaps the MXU.
    sgn = jnp.where(z < 0.0, -1.0, 1.0).astype(jnp.float32)
    a = jnp.abs(z)
    t = pl.reciprocal(1.0 + 0.3275911 * a, approx=True)
    poly = t * (0.254829592 + t * (-0.284496736 + t * (1.421413741 +
           t * (-1.453152027 + t * 1.061405429))))
    return sgn * (1.0 - poly * jnp.exp(-a * a))


def _gelu_exact(x):
    # nn.GELU() default = exact erf-based GELU.
    return 0.5 * x * (1.0 + _erf_f32(x * _INV_SQRT2))


def _mlp_kernel(x_ref, w1_ref, b1_ref, w2_ref, b2_ref, o_ref, acc_ref):
    """One (token-tile, branch, hidden-chunk) step of fc1 -> GELU -> fc2.

    grid = (M tiles ["parallel"], branches ["arbitrary"], H chunks ["arbitrary"]).
    A (tm, O) f32 accumulator lives in VMEM scratch; the output block is written
    once, at the last (branch, H-chunk) step for this token tile.
    """
    b = pl.program_id(1)
    h = pl.program_id(2)

    @pl.when((b == 0) & (h == 0))
    def _():
        acc_ref[...] = jnp.zeros_like(acc_ref)

    # fc1 chunk: (tm, C) bf16 @ (C, th) bf16 -> f32 accumulate on the MXU.
    hid = jnp.dot(x_ref[...], w1_ref[0], preferred_element_type=jnp.float32)
    hid = _gelu_exact(hid + b1_ref[...])

    # fc2 bias (already branch-masked & gumbel-scaled) is added once per branch.
    @pl.when(h == 0)
    def _():
        acc_ref[...] += b2_ref[0]

    # fc2 chunk: (tm, th) bf16 @ (th, O) bf16 -> f32 accumulate.
    acc_ref[...] += jnp.dot(hid.astype(w2_ref.dtype), w2_ref[0],
                            preferred_element_type=jnp.float32)

    @pl.when((b == pl.num_programs(1) - 1) & (h == pl.num_programs(2) - 1))
    def _():
        o_ref[...] = acc_ref[...].astype(o_ref.dtype)


def _run_mlp(x2d, w1s, b1p, w2s, b2s, *, th, out_dtype, tm_max=512):
    """x2d: (M, C_pad) bf16; w1s: (B, C_pad, H_pad) bf16; b1p: (1, H_pad) f32;
    w2s: (B, H_pad, O_pad) bf16; b2s: (B, 1, O_pad) f32.  Returns (M, O_pad)."""
    M, C_pad = x2d.shape
    B, _, H_pad = w1s.shape
    O_pad = w2s.shape[2]
    n_h = H_pad // th

    # Token tiling with remainder handled by zero-padding rows.
    n_m = max(1, _cdiv(M, tm_max))
    tm = _round_up(_cdiv(M, n_m), 8)
    M_pad = n_m * tm
    if M_pad != M:
        x2d = jnp.pad(x2d, ((0, M_pad - M), (0, 0)))

    out = pl.pallas_call(
        _mlp_kernel,
        out_shape=jax.ShapeDtypeStruct((M_pad, O_pad), out_dtype),
        grid=(n_m, B, n_h),
        in_specs=[
            pl.BlockSpec((tm, C_pad), lambda i, b, h: (i, 0)),
            pl.BlockSpec((1, C_pad, th), lambda i, b, h: (b, 0, h)),
            pl.BlockSpec((1, th), lambda i, b, h: (0, h)),
            pl.BlockSpec((1, th, O_pad), lambda i, b, h: (b, h, 0)),
            pl.BlockSpec((1, 1, O_pad), lambda i, b, h: (b, 0, 0)),
        ],
        out_specs=pl.BlockSpec((tm, O_pad), lambda i, b, h: (i, 0)),
        scratch_shapes=[pltpu.VMEM((tm, O_pad), jnp.float32)],
        compiler_params=pltpu.CompilerParams(
            dimension_semantics=("parallel", "arbitrary", "arbitrary"),
            vmem_limit_bytes=48 * 1024 * 1024,
        ),
    )(x2d, w1s, b1p, w2s, b2s)
    return out[:M]


def init_mlp_params(key, in_features, hidden_features, out_features):
    # torch.nn.Linear default init: U(-1/sqrt(fan_in), 1/sqrt(fan_in)).
    # Weights stored already transposed: w1 (C,H), w2 (H,O) so kernels do x @ W.
    k1, k2, k3, k4 = jax.random.split(key, 4)
    lim1 = 1.0 / np.sqrt(in_features)
    lim2 = 1.0 / np.sqrt(hidden_features)
    return dict(
        w1=jax.random.uniform(k1, (in_features, hidden_features), jnp.float32, -lim1, lim1),
        b1=jax.random.uniform(k2, (1, hidden_features), jnp.float32, -lim1, lim1),
        w2=jax.random.uniform(k3, (hidden_features, out_features), jnp.float32, -lim2, lim2),
        b2=jax.random.uniform(k4, (1, out_features), jnp.float32, -lim2, lim2),
    )


def _geom(C, H, O):
    """Lane-dense padded sizes + hidden-chunk size."""
    C_pad = _round_up(C, 128)
    O_pad = _round_up(O, 128)
    n_h = max(1, _cdiv(H, 512))
    th = _round_up(_cdiv(H, n_h), 128)
    H_pad = n_h * th
    return C_pad, H_pad, O_pad, th


def mlp_forward(x, gumbel_weights, params, *, alpha=(1, 2, 3), depth=0,
                block_depth=2, total_depth=14, latency=0.0):
    """Mirrors Mlp.forward (drop=0.0 -> Dropout is identity)."""
    L, N, C = x.shape
    H = params["w1"].shape[1]
    O = params["w2"].shape[1]
    total_depth_m1 = total_depth - 1  # the module stores total_depth - 1

    C_pad, H_pad, O_pad, th = _geom(C, H, O)

    # Padded / bf16 weights (shared fc1 bias stays f32, added in f32 inside kernel).
    w1p = _pad2(params["w1"], C_pad, H_pad)
    b1p = _pad2(params["b1"], 1, H_pad)
    w2p = _pad2(params["w2"], H_pad, O_pad)
    b2p = _pad2(params["b2"], 1, O_pad)

    Lh = L // 2
    Ls = L - Lh
    xl = _pad2(x[:Lh].reshape(-1, C), Lh * N, C_pad).astype(jnp.bfloat16)

    # ---- large branch: plain fc1 -> GELU -> fc2 ----
    y_large = _run_mlp(
        xl,
        w1p.astype(jnp.bfloat16)[None],          # (1, C_pad, H_pad)
        b1p,
        w2p.astype(jnp.bfloat16)[None],          # (1, H_pad, O_pad)
        b2p[None],                               # (1, 1, O_pad)
        th=th, out_dtype=x.dtype,
    )[:, :O].reshape(Lh, N, O)

    latency = jnp.asarray(latency, jnp.float32)
    g = jnp.asarray(gumbel_weights, jnp.float32)

    if block_depth <= depth <= total_depth_m1 - block_depth:
        # ---- small branches, fused into one kernel ----
        # Channel masks and gumbel scaling are folded into per-branch weights:
        #   mask(x)[:, cut_in:]=0  ==  x @ (w1 with rows>=cut_in zeroed)
        #   mask(y)[:, cut_out:]=0 ==  h @ (w2 with cols>=cut_out zeroed) + masked b2
        # A zero gumbel weight contributes exactly 0, matching the skipped branch.
        row_c = jnp.arange(C_pad)[:, None]
        col_o = jnp.arange(O_pad)[None, :]
        w1_l, w2_l, b2_l = [], [], []
        for i in range(3):
            cut_in = C // alpha[i]
            cut_out = O // alpha[i]
            w1_l.append(jnp.where(row_c < cut_in, w1p, 0.0))
            w2_l.append(jnp.where(col_o < cut_out, w2p, 0.0) * g[i])
            b2_l.append(jnp.where(col_o < cut_out, b2p, 0.0) * g[i])
        w1S = jnp.stack(w1_l).astype(jnp.bfloat16)   # (3, C_pad, H_pad)
        w2S = jnp.stack(w2_l).astype(jnp.bfloat16)   # (3, H_pad, O_pad)
        b2S = jnp.stack(b2_l)                        # (3, 1, O_pad) f32
        # TODO(synk): further MXU-flop savings would need per-branch w1/w2 slicing
        # (ragged tile widths); masked weights keep one fused lane-dense kernel.

        xs = _pad2(x[Lh:].reshape(-1, C), Ls * N, C_pad).astype(jnp.bfloat16)
        y_small = _run_mlp(xs, w1S, b1p, w2S, b2S, th=th,
                           out_dtype=x.dtype)[:, :O].reshape(Ls, N, O)

        # Latency bookkeeping (matches torch operator precedence); a 0 gumbel
        # weight adds 0, so no host-side branch / device_get is needed.
        flops_factor = (2, 4, 4)
        for i in range(3):
            flops = flops_factor[i] * N * O // alpha[i] * H
            latency = latency + flops * g[i]

        out = jnp.concatenate([y_large, y_small], axis=0)
    else:
        out = jnp.concatenate([y_large, y_large], axis=0)

    return out, latency, gumbel_weights


def _ref_mlp(x2d, p, cut_in=None, cut_out=None):
    # Pure-JAX f32 reference (exact erf GELU) for correctness checking.
    from jax.scipy.special import erf
    x = x2d
    if cut_in is not None:
        x = x.at[:, cut_in:].set(0.0)
    h = x @ p["w1"] + p["b1"]
    h = 0.5 * h * (1.0 + erf(h * _INV_SQRT2))
    y = h @ p["w2"] + p["b2"]
    if cut_out is not None:
        y = y.at[:, cut_out:].set(0.0)
    return y


if __name__ == "__main__":
    key = jax.random.PRNGKey(0)
    kx, kp = jax.random.split(key)

    L, N, C, Hd = 8, 2, 64, 128          # (l, N, C) with hidden_features = 128
    alpha = (1, 2, 3)
    depth, block_depth, total_depth = 3, 2, 14   # -> takes the 3-branch "small" path

    x = jax.random.normal(kx, (L, N, C), jnp.float32)
    params = init_mlp_params(kp, C, Hd, C)       # out_features defaults to in_features
    gumbel_weights = jnp.array([0.6, 0.3, 0.1], jnp.float32)

    out, latency, gw = mlp_forward(x, gumbel_weights, params, alpha=alpha,
                                   depth=depth, block_depth=block_depth,
                                   total_depth=total_depth)
    jax.block_until_ready(out)
    jax.block_until_ready(latency)

    # Reference check (exact f32 math); tolerance sized for bf16 MXU inputs.
    xl = x[: L // 2].reshape(-1, C)
    xs = x[L // 2:].reshape(-1, C)
    ref_large = _ref_mlp(xl, params).reshape(L // 2, N, C)
    ref_small = jnp.zeros_like(ref_large)
    for i in range(3):
        yi = _ref_mlp(xs, params, cut_in=C // alpha[i], cut_out=C // alpha[i])
        ref_small = ref_small + yi.reshape(L // 2, N, C) * gumbel_weights[i]
    ref = jnp.concatenate([ref_large, ref_small], axis=0)
    np.testing.assert_allclose(np.asarray(out), np.asarray(ref), rtol=2e-2, atol=2e-2)

    # Out-of-range depth path: output must be concat(y_large, y_large).
    out2, _, _ = mlp_forward(x, gumbel_weights, params, alpha=alpha,
                             depth=0, block_depth=block_depth,
                             total_depth=total_depth)
    jax.block_until_ready(out2)
    np.testing.assert_allclose(np.asarray(out2[:L // 2]), np.asarray(out2[L // 2:]),
                               rtol=0, atol=0)

    print("KERNEL_OK")
</pallas_src>

<mosaic_0001>
module attributes {stable_mosaic.version = 11 : i64} {
  func.func @_mlp_kernel(%arg0: i32, %arg1: i32, %arg2: i32, %arg3: memref<8x128xbf16, #tpu.memory_space<vmem>>, %arg4: memref<1x128x128xbf16, #tpu.memory_space<vmem>>, %arg5: memref<1x128xf32, #tpu.memory_space<vmem>>, %arg6: memref<1x128x128xbf16, #tpu.memory_space<vmem>>, %arg7: memref<1x1x128xf32, #tpu.memory_space<vmem>>, %arg8: memref<8x128xf32, #tpu.memory_space<vmem>>, %arg9: memref<8x128xf32, #tpu.memory_space<vmem>>) attributes {dimension_semantics = [#tpu.dimension_semantics<parallel>, #tpu.dimension_semantics<arbitrary>, #tpu.dimension_semantics<arbitrary>], iteration_bounds = array<i64: 1, 1, 1>, scalar_prefetch = 0 : i64, scratch_operands = 1 : i64, tpu.core_type = #tpu.core_type<tc>, window_params = [{transform_indices = @transform_0, window_bounds = array<i64: 8, 128>}, {transform_indices = @transform_1, window_bounds = array<i64: 1, 128, 128>}, {transform_indices = @transform_2, window_bounds = array<i64: 1, 128>}, {transform_indices = @transform_3, window_bounds = array<i64: 1, 128, 128>}, {transform_indices = @transform_4, window_bounds = array<i64: 1, 1, 128>}, {transform_indices = @transform_5, window_bounds = array<i64: 8, 128>}]} {
    %c0_i32 = arith.constant 0 : i32
    %0 = arith.cmpi eq, %arg1, %c0_i32 : i32
    %c0_i32_0 = arith.constant 0 : i32
    %1 = arith.cmpi eq, %arg2, %c0_i32_0 : i32
    %2 = arith.andi %0, %1 : i1
    %3 = arith.extui %2 : i1 to i32
    %c0_i32_1 = arith.constant 0 : i32
    %4 = arith.cmpi ne, %3, %c0_i32_1 : i32
    scf.if %4 {
      %cst_36 = arith.constant 0.000000e+00 : f32
      %67 = vector.broadcast %cst_36 : f32 to vector<8x128xf32>
      %c0_37 = arith.constant 0 : index
      %c0_38 = arith.constant 0 : index
      %68 = vector.load %arg9[%c0_37, %c0_38] : memref<8x128xf32, #tpu.memory_space<vmem>>, vector<8x128xf32>
      tpu.vector_store %arg9[%c0_37, %c0_38], %67 {strides = array<i32>} : memref<8x128xf32, #tpu.memory_space<vmem>>, vector<8x128xf32>,
    } else {
    }
    %c0 = arith.constant 0 : index
    %c0_2 = arith.constant 0 : index
    %5 = vector.load %arg3[%c0, %c0_2] : memref<8x128xbf16, #tpu.memory_space<vmem>>, vector<8x128xbf16>
    %c0_3 = arith.constant 0 : index
    %c0_4 = arith.constant 0 : index
    %c0_5 = arith.constant 0 : index
    %6 = vector.load %arg4[%c0_3, %c0_4, %c0_5] : memref<1x128x128xbf16, #tpu.memory_space<vmem>>, vector<1x128x128xbf16>
    %7 = vector.shape_cast %6 : vector<1x128x128xbf16> to vector<128x128xbf16>
    %cst = arith.constant dense<0.000000e+00> : vector<8x128xf32>
    %8 = tpu.matmul %5, %7, %cst {dimension_numbers = #tpu.dot_dimension_numbers<[1], [0], [0], [1], [0, 0, 1, 1], [], []>} : vector<8x128xbf16>, vector<128x128xbf16>, vector<8x128xf32> -> vector<8x128xf32>
    %c0_6 = arith.constant 0 : index
    %c0_7 = arith.constant 0 : index
    %9 = vector.load %arg5[%c0_6, %c0_7] : memref<1x128xf32, #tpu.memory_space<vmem>>, vector<1x128xf32>
    %10 = vector.broadcast %9 : vector<1x128xf32> to vector<8x128xf32>
    %11 = arith.addf %8, %10 : vector<8x128xf32>
    %cst_8 = arith.constant 5.000000e-01 : f32
    %12 = vector.broadcast %cst_8 : f32 to vector<8x128xf32>
    %13 = arith.mulf %12, %11 : vector<8x128xf32>
    %cst_9 = arith.constant 0.707106769 : f32
    %14 = vector.broadcast %cst_9 : f32 to vector<8x128xf32>
    %15 = arith.mulf %11, %14 : vector<8x128xf32>
    %cst_10 = arith.constant 0.000000e+00 : f32
    %16 = vector.broadcast %cst_10 : f32 to vector<8x128xf32>
    %17 = arith.cmpf olt, %15, %16 : vector<8x128xf32>
    %cst_11 = arith.constant -1.000000e+00 : f32
    %cst_12 = arith.constant 1.000000e+00 : f32
    %18 = vector.broadcast %cst_11 : f32 to vector<8x128xf32>
    %19 = vector.broadcast %cst_12 : f32 to vector<8x128xf32>
    %20 = arith.select %17, %18, %19 : vector<8x128xi1>, vector<8x128xf32>
    %21 = math.absf %15 : vector<8x128xf32>
    %cst_13 = arith.constant 0.327591091 : f32
    %22 = vector.broadcast %cst_13 : f32 to vector<8x128xf32>
    %23 = arith.mulf %22, %21 : vector<8x128xf32>
    %cst_14 = arith.constant 1.000000e+00 : f32
    %24 = vector.broadcast %cst_14 : f32 to vector<8x128xf32>
    %25 = arith.addf %24, %23 : vector<8x128xf32>
    %26 = tpu.reciprocal %25 {approx = true} : vector<8x128xf32> -> vector<8x128xf32>
    %cst_15 = arith.constant 1.06140542 : f32
    %27 = vector.broadcast %cst_15 : f32 to vector<8x128xf32>
    %28 = arith.mulf %26, %27 : vector<8x128xf32>
    %cst_16 = arith.constant -1.45315206 : f32
    %29 = vector.broadcast %cst_16 : f32 to vector<8x128xf32>
    %30 = arith.addf %29, %28 : vector<8x128xf32>
    %31 = arith.mulf %26, %30 : vector<8x128xf32>
    %cst_17 = arith.constant 1.42141378 : f32
    %32 = vector.broadcast %cst_17 : f32 to vector<8x128xf32>
    %33 = arith.addf %32, %31 : vector<8x128xf32>
    %34 = arith.mulf %26, %33 : vector<8x128xf32>
    %cst_18 = arith.constant -0.284496725 : f32
    %35 = vector.broadcast %cst_18 : f32 to vector<8x128xf32>
    %36 = arith.addf %35, %34 : vector<8x128xf32>
    %37 = arith.mulf %26, %36 : vector<8x128xf32>
    %cst_19 = arith.constant 0.254829586 : f32
    %38 = vector.broadcast %cst_19 : f32 to vector<8x128xf32>
    %39 = arith.addf %38, %37 : vector<8x128xf32>
    %40 = arith.mulf %26, %39 : vector<8x128xf32>
    %cst_20 = arith.constant 0.000000e+00 : f32
    %41 = vector.broadcast %cst_20 : f32 to vector<8x128xf32>
    %42 = arith.subf %41, %21 : vector<8x128xf32>
    %43 = arith.mulf %42, %21 : vector<8x128xf32>
    %44 = math.exp %43 : vector<8x128xf32>
    %45 = arith.mulf %40, %44 : vector<8x128xf32>
    %cst_21 = arith.constant 1.000000e+00 : f32
    %46 = vector.broadcast %cst_21 : f32 to vector<8x128xf32>
    %47 = arith.subf %46, %45 : vector<8x128xf32>
    %48 = arith.mulf %20, %47 : vector<8x128xf32>
    %cst_22 = arith.constant 1.000000e+00 : f32
    %49 = vector.broadcast %cst_22 : f32 to vector<8x128xf32>
    %50 = arith.addf %49, %48 : vector<8x128xf32>
    %51 = arith.mulf %13, %50 : vector<8x128xf32>
    %c0_i32_23 = arith.constant 0 : i32
    %52 = arith.cmpi eq, %arg2, %c0_i32_23 : i32
    %53 = arith.extui %52 : i1 to i32
    %c0_i32_24 = arith.constant 0 : i32
    %54 = arith.cmpi ne, %53, %c0_i32_24 : i32
    scf.if %54 {
      %c0_36 = arith.constant 0 : index
      %c0_37 = arith.constant 0 : index
      %67 = vector.load %arg9[%c0_36, %c0_37] : memref<8x128xf32, #tpu.memory_space<vmem>>, vector<8x128xf32>
      %c0_38 = arith.constant 0 : index
      %c0_39 = arith.constant 0 : index
      %c0_40 = arith.constant 0 : index
      %68 = vector.load %arg7[%c0_38, %c0_39, %c0_40] : memref<1x1x128xf32, #tpu.memory_space<vmem>>, vector<1x1x128xf32>
      %69 = vector.shape_cast %68 : vector<1x1x128xf32> to vector<1x128xf32>
      %70 = vector.broadcast %69 : vector<1x128xf32> to vector<8x128xf32>
      %71 = arith.addf %67, %70 : vector<8x128xf32>
      %c0_41 = arith.constant 0 : index
      %c0_42 = arith.constant 0 : index
      %72 = vector.load %arg9[%c0_41, %c0_42] : memref<8x128xf32, #tpu.memory_space<vmem>>, vector<8x128xf32>
      tpu.vector_store %arg9[%c0_41, %c0_42], %71 {strides = array<i32>} : memref<8x128xf32, #tpu.memory_space<vmem>>, vector<8x128xf32>,
    } else {
    }
    %c0_25 = arith.constant 0 : index
    %c0_26 = arith.constant 0 : index
    %55 = vector.load %arg9[%c0_25, %c0_26] : memref<8x128xf32, #tpu.memory_space<vmem>>, vector<8x128xf32>
    %56 = arith.truncf %51 : vector<8x128xf32> to vector<8x128xbf16>
    %c0_27 = arith.constant 0 : index
    %c0_28 = arith.constant 0 : index
    %c0_29 = arith.constant 0 : index
    %57 = vector.load %arg6[%c0_27, %c0_28, %c0_29] : memref<1x128x128xbf16, #tpu.memory_space<vmem>>, vector<1x128x128xbf16>
    %58 = vector.shape_cast %57 : vector<1x128x128xbf16> to vector<128x128xbf16>
    %cst_30 = arith.constant dense<0.000000e+00> : vector<8x128xf32>
    %59 = tpu.matmul %56, %58, %cst_30 {dimension_numbers = #tpu.dot_dimension_numbers<[1], [0], [0], [1], [0, 0, 1, 1], [], []>} : vector<8x128xbf16>, vector<128x128xbf16>, vector<8x128xf32> -> vector<8x128xf32>
    %60 = arith.addf %55, %59 : vector<8x128xf32>
    %c0_31 = arith.constant 0 : index
    %c0_32 = arith.constant 0 : index
    %61 = vector.load %arg9[%c0_31, %c0_32] : memref<8x128xf32, #tpu.memory_space<vmem>>, vector<8x128xf32>
    tpu.vector_store %arg9[%c0_31, %c0_32], %60 {strides = array<i32>} : memref<8x128xf32, #tpu.memory_space<vmem>>, vector<8x128xf32>,
    %c0_i32_33 = arith.constant 0 : i32
    %62 = arith.cmpi eq, %arg1, %c0_i32_33 : i32
    %c0_i32_34 = arith.constant 0 : i32
    %63 = arith.cmpi eq, %arg2, %c0_i32_34 : i32
    %64 = arith.andi %62, %63 : i1
    %65 = arith.extui %64 : i1 to i32
    %c0_i32_35 = arith.constant 0 : i32
    %66 = arith.cmpi ne, %65, %c0_i32_35 : i32
    scf.if %66 {
      %c0_36 = arith.constant 0 : index
      %c0_37 = arith.constant 0 : index
      %67 = vector.load %arg9[%c0_36, %c0_37] : memref<8x128xf32, #tpu.memory_space<vmem>>, vector<8x128xf32>
      %c0_38 = arith.constant 0 : index
      %c0_39 = arith.constant 0 : index
      %68 = vector.load %arg8[%c0_38, %c0_39] : memref<8x128xf32, #tpu.memory_space<vmem>>, vector<8x128xf32>
      tpu.vector_store %arg8[%c0_38, %c0_39], %67 {strides = array<i32>} : memref<8x128xf32, #tpu.memory_space<vmem>>, vector<8x128xf32>,
    } else {
    }
    return
  }
  func.func @transform_0(%arg0: i32, %arg1: i32, %arg2: i32) -> (i32, i32) {
    %c0_i32 = arith.constant 0 : i32
    %c0_i32_0 = arith.constant 0 : i32
    return %arg0, %c0_i32 : i32, i32
  }
  func.func @transform_1(%arg0: i32, %arg1: i32, %arg2: i32) -> (i32, i32, i32) {
    %c0_i32 = arith.constant 0 : i32
    %c0_i32_0 = arith.constant 0 : i32
    return %arg1, %c0_i32, %arg2 : i32, i32, i32
  }
  func.func @transform_2(%arg0: i32, %arg1: i32, %arg2: i32) -> (i32, i32) {
    %c0_i32 = arith.constant 0 : i32
    %c0_i32_0 = arith.constant 0 : i32
    return %c0_i32, %arg2 : i32, i32
  }
  func.func @transform_3(%arg0: i32, %arg1: i32, %arg2: i32) -> (i32, i32, i32) {
    %c0_i32 = arith.constant 0 : i32
    %c0_i32_0 = arith.constant 0 : i32
    return %arg1, %arg2, %c0_i32 : i32, i32, i32
  }
  func.func @transform_4(%arg0: i32, %arg1: i32, %arg2: i32) -> (i32, i32, i32) {
    %c0_i32 = arith.constant 0 : i32
    %c0_i32_0 = arith.constant 0 : i32
    %c0_i32_1 = arith.constant 0 : i32
    return %arg1, %c0_i32, %c0_i32_0 : i32, i32, i32
  }
  func.func @transform_5(%arg0: i32, %arg1: i32, %arg2: i32) -> (i32, i32) {
    %c0_i32 = arith.constant 0 : i32
    %c0_i32_0 = arith.constant 0 : i32
    return %arg0, %c0_i32 : i32, i32
  }
}

</mosaic_0001>

<llo_original>
// kernel: tpu_custom_call.1
$region0: #{tpu_custom_call.1}
  #allocation0 [shape = 'u32[]', space=smem, size = 0x4, offset = 0x4, fixed_abs, tag = 'smem constant byte address 0x4 - core index']
  #allocation1 [shape = 'u32[144,128]{1,0:T(1,128)}', space=vmem, size = 0x12000, scoped, tag = 'internal scratch']
  #allocation2 [shape = 'f32[8,128]{1,0:T(8,128)}', space=vmem, size = 0x1000, scoped, tag = 'scratch operand']
  %s0 = inlined_call_operand.hbm [shape: bf16[8,128], index: 0, kind: input, shape index: {}]
  %s1 = inlined_call_operand.hbm [shape: bf16[1,128,128], index: 1, kind: input, shape index: {}]
  %s2 = inlined_call_operand.vmem [shape: f32[1,128], index: 2, kind: input, shape index: {}]
  %s3 = inlined_call_operand.hbm [shape: bf16[1,128,128], index: 3, kind: input, shape index: {}]
  %s4 = inlined_call_operand.vmem [shape: f32[1,1,128], index: 4, kind: input, shape index: {}]
  %s5 = inlined_call_operand.hbm [shape: f32[8,128], index: 5, kind: output, shape index: {}]
  %s6 = sld [smem:[#allocation0]]
  $region54: #{tpu_custom_call.1} parent=0
    _
  %s8 = ssub.s32 1, %s6
  %s9 = scalar_select 0, %s8, %s6
  $region1: #{tpu_custom_call.1} parent=0
    #allocation3 [shape = 'u8[2048]{0}', space=vmem, size = 0x800, scoped, tag = 'input window, operand 0, single buffered']
    #allocation4 [shape = 's32[1]{0}', space=sflag, size = 0x4, scoped, tag = 'scoped memory for tpu_custom_call.1']
    #allocation5 [shape = 's32[1]{0}', space=sflag, size = 0x4, scoped, tag = 'scoped memory for tpu_custom_call.1']
    #allocation6 [shape = 'u8[32768]{0}', space=vmem, size = 0x8000, scoped, tag = 'input window, operand 1, single buffered']
    #allocation7 [shape = 's32[1]{0}', space=sflag, size = 0x4, scoped, tag = 'scoped memory for tpu_custom_call.1']
    #allocation8 [shape = 'u8[32768]{0}', space=vmem, size = 0x8000, scoped, tag = 'input window, operand 3, single buffered']
    #allocation9 [shape = 'u8[4096]{0}', space=vmem, size = 0x1000, scoped, tag = 'output window, operand 0, single buffered']
    %10 = vsyncpa [#allocation4], 0
    %11 = vsyncpa [#allocation7], 0
    %12 = vsyncpa [#allocation5], 0
    // Predicated region
    $region2: #{tpu_custom_call.1} parent=1 // pred_check
      _
    $region3: #{tpu_custom_call.1} parent=1 // pred_check_branch
      %14 = sbr.rel (0) target = $region5
    $region4: #{tpu_custom_call.1} parent=1 // pred_region
      %s16 = ssub.s32 64, 64
      %17 = vsyncadd [#allocation4], %s16
      %s19 = sshll.u32 [#allocation3], 4
      %s20 = int_to_ptr.vmem [resolvable:$true] %s19
      %22 = dma.hbm_to_vmem [thread:$0]  %s0, 64, %s20, [#allocation4]
    $region5: #{tpu_custom_call.1} parent=1 // pred_fallthru
      _
    // Predicated region
    $region6: #{tpu_custom_call.1} parent=1 // pred_check
      _
    $region7: #{tpu_custom_call.1} parent=1 // pred_check_branch
      %24 = sbr.rel (0) target = $region9
    $region8: #{tpu_custom_call.1} parent=1 // pred_region
      %s26 = ssub.s32 1024, 1024
      %27 = vsyncadd [#allocation7], %s26
      %s28 = sshll.u32 [#allocation6], 4
      %s29 = int_to_ptr.vmem [resolvable:$true] %s28
      %34 = dma.hbm_to_vmem [thread:$0]  %s1, 1024, %s29, [#allocation7], 64, 64, 4
    $region9: #{tpu_custom_call.1} parent=1 // pred_fallthru
      _
    // Predicated region
    $region10: #{tpu_custom_call.1} parent=1 // pred_check
      _
    $region11: #{tpu_custom_call.1} parent=1 // pred_check_branch
      %36 = sbr.rel (0) target = $region13
    $region12: #{tpu_custom_call.1} parent=1 // pred_region
      _
    $region13: #{tpu_custom_call.1} parent=1 // pred_fallthru
      _
    // Predicated region
    $region14: #{tpu_custom_call.1} parent=1 // pred_check
      _
    $region15: #{tpu_custom_call.1} parent=1 // pred_check_branch
      %38 = sbr.rel (0) target = $region17
    $region16: #{tpu_custom_call.1} parent=1 // pred_region
      %s40 = ssub.s32 1024, 1024
      %41 = vsyncadd [#allocation7], %s40
      %s42 = sshll.u32 [#allocation8], 4
      %s43 = int_to_ptr.vmem [resolvable:$true] %s42
      %48 = dma.hbm_to_vmem [thread:$0]  %s3, 1024, %s43, [#allocation7], 64, 64, 4
    $region17: #{tpu_custom_call.1} parent=1 // pred_fallthru
      _
    // Predicated region
    $region18: #{tpu_custom_call.1} parent=1 // pred_check
      _
    $region19: #{tpu_custom_call.1} parent=1 // pred_check_branch
      %50 = sbr.rel (0) target = $region21
    $region20: #{tpu_custom_call.1} parent=1 // pred_region
      _
    $region21: #{tpu_custom_call.1} parent=1 // pred_fallthru
      _
    // Predicated region
    $region22: #{tpu_custom_call.1} parent=1 // pred_check
      _
    $region23: #{tpu_custom_call.1} parent=1 // pred_check_branch
      %52 = sbr.rel (0) target = $region25
    $region24: #{tpu_custom_call.1} parent=1 // pred_region
      %53 = dma.done [#allocation4], 64
    $region25: #{tpu_custom_call.1} parent=1 // pred_fallthru
      _
    // Predicated region
    $region26: #{tpu_custom_call.1} parent=1 // pred_check
      _
    $region27: #{tpu_custom_call.1} parent=1 // pred_check_branch
      %55 = sbr.rel (0) target = $region29
    $region28: #{tpu_custom_call.1} parent=1 // pred_region
      %56 = dma.done [#allocation7], 1024
    $region29: #{tpu_custom_call.1} parent=1 // pred_fallthru
      _
    // Predicated region
    $region30: #{tpu_custom_call.1} parent=1 // pred_check
      _
    $region31: #{tpu_custom_call.1} parent=1 // pred_check_branch
      %58 = sbr.rel (0) target = $region33
    $region32: #{tpu_custom_call.1} parent=1 // pred_region
      %59 = dma.done [#allocation7], 1024
    $region33: #{tpu_custom_call.1} parent=1 // pred_fallthru
      _
    %p61 = scmp.eq.s32.totalorder 0, 0
    %p62 = scmp.eq.s32.totalorder 0, 0
    %p63 = pnand %p61, %p62
    %p64 = pneg %p63
    // Predicated region
    $region34: #{tpu_custom_call.1} parent=1 // pred_check
      _
    $region35: #{tpu_custom_call.1} parent=1 // pred_check_branch
      %66 = sbr.rel (%p63) target = $region37
    $region36: #{tpu_custom_call.1} parent=1 // pred_region
      %67 = vst [vmem:[#allocation2] sm:$0xff] 0.0
    $region37: #{tpu_custom_call.1} parent=1 // pred_fallthru
      _
    %v68 = vld [vmem:[#allocation3] sm:$0xf]
    %v69 = vld [vmem:[#allocation6] sm:$0xf]
    %v70 = vld [vmem:[#allocation6 + $0x4] sm:$0xf]
    %v71 = vld [vmem:[#allocation6 + $0x8] sm:$0xf]
    %v72 = vld [vmem:[#allocation6 + $0xc] sm:$0xf]
    %v73 = vld [vmem:[#allocation6 + $0x10] sm:$0xf]
    %v74 = vld [vmem:[#allocation6 + $0x14] sm:$0xf]
    %v75 = vld [vmem:[#allocation6 + $0x18] sm:$0xf]
    %v76 = vld [vmem:[#allocation6 + $0x1c] sm:$0xf]
    %v77 = vld [vmem:[#allocation6 + $0x20] sm:$0xf]
    %v78 = vld [vmem:[#allocation6 + $0x24] sm:$0xf]
    %v79 = vld [vmem:[#allocation6 + $0x28] sm:$0xf]
    %v80 = vld [vmem:[#allocation6 + $0x2c] sm:$0xf]
    %v81 = vld [vmem:[#allocation6 + $0x30] sm:$0xf]
    %v82 = vld [vmem:[#allocation6 + $0x34] sm:$0xf]
    %v83 = vld [vmem:[#allocation6 + $0x38] sm:$0xf]
    %v84 = vld [vmem:[#allocation6 + $0x3c] sm:$0xf]
    %v85 = vld [vmem:[%s2] sm:$0x1]
    %v87 = vlaneseq
    %v88 = vshrl.u32 %v87, 7
    %v89 = vsub.s32 0, %v88
    %v90 = vrot.slane %v85, %v89
    %v108 = vunpack.c.l.b16 %v69
    %v109 = vunpack.c.l.b16 %v70
    %v110 = vunpack.c.l.b16 %v71
    %v111 = vunpack.c.l.b16 %v72
    %v112 = vunpack.c.l.b16 %v73
    %v113 = vunpack.c.l.b16 %v74
    %v114 = vunpack.c.l.b16 %v75
    %v115 = vunpack.c.l.b16 %v76
    %v116 = vunpack.c.l.b16 %v77
    %v117 = vunpack.c.l.b16 %v78
    %v118 = vunpack.c.l.b16 %v79
    %v119 = vunpack.c.l.b16 %v80
    %v120 = vunpack.c.l.b16 %v81
    %v121 = vunpack.c.l.b16 %v82
    %v122 = vunpack.c.l.b16 %v83
    %v123 = vunpack.c.l.b16 %v84
    %v124 = vpack.c.b16 %v109, %v108
    %v125 = vpack.c.b16 %v111, %v110
    %v126 = vpack.c.b16 %v113, %v112
    %v127 = vpack.c.b16 %v115, %v114
    %v128 = vpack.c.b16 %v117, %v116
    %v129 = vpack.c.b16 %v119, %v118
    %v130 = vpack.c.b16 %v121, %v120
    %v131 = vpack.c.b16 %v123, %v122
    %140 = vmatprep.subr.bf16.mxu0 0
    %141 = vmatpush1.bf16.msra.mxu0 %v124
    %142 = vmatprep.subr.bf16.mxu0 0
    %143 = vmatpush1.bf16.msra.mxu0 %v125
    %144 = vmatprep.subr.bf16.mxu0 0
    %145 = vmatpush1.bf16.msra.mxu0 %v126
    %146 = vmatprep.subr.bf16.mxu0 0
    %147 = vmatpush1.bf16.msra.mxu0 %v127
    %148 = vmatprep.subr.bf16.mxu0 0
    %149 = vmatpush1.bf16.msra.mxu0 %v128
    %150 = vmatprep.subr.bf16.mxu0 0
    %151 = vmatpush1.bf16.msra.mxu0 %v129
    %152 = vmatprep.subr.bf16.mxu0 0
    %153 = vmatpush1.bf16.msra.mxu0 %v130
    %154 = vmatprep.subr.bf16.mxu0 0
    %155 = vmatpush1.bf16.msra.mxu0 %v131
    %156 = vmatprep.subr.bf16.mxu0 0
    %157 = vmatpush1.bf16.msra.mxu0 0
    %158 = vmatprep.subr.bf16.mxu0 0
    %159 = vmatpush1.bf16.msra.mxu0 0
    %160 = vmatprep.subr.bf16.mxu0 0
    %161 = vmatpush1.bf16.msra.mxu0 0
    %162 = vmatprep.subr.bf16.mxu0 0
    %163 = vmatpush1.bf16.msra.mxu0 0
    %164 = vmatprep.subr.bf16.mxu0 0
    %165 = vmatpush1.bf16.msra.mxu0 0
    %166 = vmatprep.subr.bf16.mxu0 0
    %167 = vmatpush1.bf16.msra.mxu0 0
    %168 = vmatprep.subr.bf16.mxu0 0
    %169 = vmatpush1.bf16.msra.mxu0 0
    %170 = vmatprep.subr.bf16.mxu0 0
    %171 = vmatpush1.bf16.msra.mxu0 0
    %172 = vmatprep.mubr.bf16.mxu0 0
    %173 = vmatmul.mubr.bf16.gmra.mrb[0].mxu0 %v68
    %v174 = vpop.f32.mrb[0].mxu0
    %v175 = vadd.f32 %v90, %v174
    %v176 = vpop.f32.mrb[0].mxu0
    %v177 = vpop.f32.mrb[0].mxu0
    %v178 = vpop.f32.mrb[0].mxu0
    %179 = vdwg.mxu0
    %v180 = vmul.f32 %v175, 0.5
    %v181 = vmul.f32 %v175, 0.70710677
    %vm182 = vcmp.lt.f32.partialorder %v181, 0.0
    %v183 = vsel %vm182, -1.0, 1.0
    %v184 = vand.u32 2147483647, %v181
    %v185 = vmul.f32 %v184, 0.3275911
    %v186 = vadd.f32 %v185, 1.0
    %v187 = vrcp.pop %v186
    %v188 = vmul.f32 %v187, 1.0614054
    %v189 = vadd.f32 %v188, -1.4531521
    %v190 = vmul.f32 %v187, %v189
    %v191 = vadd.f32 %v190, 1.4214138
    %v192 = vmul.f32 %v187, %v191
    %v193 = vadd.f32 %v192, -0.28449672
    %v194 = vmul.f32 %v187, %v193
    %v195 = vadd.f32 %v194, 0.2548296
    %v196 = vmul.f32 %v187, %v195
    %v197 = vsub.f32 0.0, %v184
    %v198 = vmul.f32 %v197, %v184
    %v199 = vmul.f32 %v198, 1.442695
    %v200 = vpow.pop %v199
    %v201 = vmul.f32 %v196, %v200
    %v202 = vsub.f32 1.0, %v201
    %v203 = vmul.f32 %v183, %v202
    %v204 = vadd.f32 %v203, 1.0
    %v205 = vmul.f32 %v180, %v204
    // Predicated region
    $region38: #{tpu_custom_call.1} parent=1 // pred_check
      %p206 = pneg %p62
    $region39: #{tpu_custom_call.1} parent=1 // pred_check_branch
      %208 = sbr.rel (%p206) target = $region41
    $region40: #{tpu_custom_call.1} parent=1 // pred_region
      %v209 = vld [vmem:[#allocation2] sm:$0xff]
      %v210 = vld [vmem:[%s4] sm:$0x1]
      %v212 = vlaneseq
      %v213 = vshrl.u32 %v212, 7
      %v214 = vsub.s32 0, %v213
      %v215 = vrot.slane %v210, %v214
      %v217 = vadd.f32 %v209, %v215
      %218 = vst [vmem:[#allocation2] sm:$0xff] %v217
    $region41: #{tpu_custom_call.1} parent=1 // pred_fallthru
      _
    %v219 = vld [vmem:[#allocation2] sm:$0xff]
    %v220 = vpack.c.bf16 %v205, %v205
    %v221 = vld [vmem:[#allocation8] sm:$0xf]
    %v222 = vld [vmem:[#allocation8 + $0x4] sm:$0xf]
    %v223 = vld [vmem:[#allocation8 + $0x8] sm:$0xf]
    %v224 = vld [vmem:[#allocation8 + $0xc] sm:$0xf]
    %v225 = vld [vmem:[#allocation8 + $0x10] sm:$0xf]
    %v226 = vld [vmem:[#allocation8 + $0x14] sm:$0xf]
    %v227 = vld [vmem:[#allocation8 + $0x18] sm:$0xf]
    %v228 = vld [vmem:[#allocation8 + $0x1c] sm:$0xf]
    %v229 = vld [vmem:[#allocation8 + $0x20] sm:$0xf]
    %v230 = vld [vmem:[#allocation8 + $0x24] sm:$0xf]
    %v231 = vld [vmem:[#allocation8 + $0x28] sm:$0xf]
    %v232 = vld [vmem:[#allocation8 + $0x2c] sm:$0xf]
    %v233 = vld [vmem:[#allocation8 + $0x30] sm:$0xf]
    %v234 = vld [vmem:[#allocation8 + $0x34] sm:$0xf]
    %v235 = vld [vmem:[#allocation8 + $0x38] sm:$0xf]
    %v236 = vld [vmem:[#allocation8 + $0x3c] sm:$0xf]
    %v253 = vunpack.c.l.b16 %v221
    %v254 = vunpack.c.l.b16 %v222
    %v255 = vunpack.c.l.b16 %v223
    %v256 = vunpack.c.l.b16 %v224
    %v257 = vunpack.c.l.b16 %v225
    %v258 = vunpack.c.l.b16 %v226
    %v259 = vunpack.c.l.b16 %v227
    %v260 = vunpack.c.l.b16 %v228
    %v261 = vunpack.c.l.b16 %v229
    %v262 = vunpack.c.l.b16 %v230
    %v263 = vunpack.c.l.b16 %v231
    %v264 = vunpack.c.l.b16 %v232
    %v265 = vunpack.c.l.b16 %v233
    %v266 = vunpack.c.l.b16 %v234
    %v267 = vunpack.c.l.b16 %v235
    %v268 = vunpack.c.l.b16 %v236
    %v269 = vpack.c.b16 %v254, %v253
    %v270 = vpack.c.b16 %v256, %v255
    %v271 = vpack.c.b16 %v258, %v257
    %v272 = vpack.c.b16 %v260, %v259
    %v273 = vpack.c.b16 %v262, %v261
    %v274 = vpack.c.b16 %v264, %v263
    %v275 = vpack.c.b16 %v266, %v265
    %v276 = vpack.c.b16 %v268, %v267
    %285 = vmatprep.subr.bf16.mxu0 0
    %286 = vmatpush1.bf16.msra.mxu0 %v269
    %287 = vmatprep.subr.bf16.mxu0 0
    %288 = vmatpush1.bf16.msra.mxu0 %v270
    %289 = vmatprep.subr.bf16.mxu0 0
    %290 = vmatpush1.bf16.msra.mxu0 %v271
    %291 = vmatprep.subr.bf16.mxu0 0
    %292 = vmatpush1.bf16.msra.mxu0 %v272
    %293 = vmatprep.subr.bf16.mxu0 0
    %294 = vmatpush1.bf16.msra.mxu0 %v273
    %295 = vmatprep.subr.bf16.mxu0 0
    %296 = vmatpush1.bf16.msra.mxu0 %v274
    %297 = vmatprep.subr.bf16.mxu0 0
    %298 = vmatpush1.bf16.msra.mxu0 %v275
    %299 = vmatprep.subr.bf16.mxu0 0
    %300 = vmatpush1.bf16.msra.mxu0 %v276
    %301 = vmatprep.subr.bf16.mxu0 0
    %302 = vmatpush1.bf16.msra.mxu0 0
    %303 = vmatprep.subr.bf16.mxu0 0
    %304 = vmatpush1.bf16.msra.mxu0 0
    %305 = vmatprep.subr.bf16.mxu0 0
    %306 = vmatpush1.bf16.msra.mxu0 0
    %307 = vmatprep.subr.bf16.mxu0 0
    %308 = vmatpush1.bf16.msra.mxu0 0
    %309 = vmatprep.subr.bf16.mxu0 0
    %310 = vmatpush1.bf16.msra.mxu0 0
    %311 = vmatprep.subr.bf16.mxu0 0
    %312 = vmatpush1.bf16.msra.mxu0 0
    %313 = vmatprep.subr.bf16.mxu0 0
    %314 = vmatpush1.bf16.msra.mxu0 0
    %315 = vmatprep.subr.bf16.mxu0 0
    %316 = vmatpush1.bf16.msra.mxu0 0
    %317 = vmatprep.mubr.bf16.mxu0 0
    %318 = vmatmul.mubr.bf16.gmra.mrb[0].mxu0 %v220
    %v319 = vpop.f32.mrb[0].mxu0
    %v320 = vadd.f32 0.0, %v319
    %v321 = vpop.f32.mrb[0].mxu0
    %v322 = vpop.f32.mrb[0].mxu0
    %v323 = vpop.f32.mrb[0].mxu0
    %324 = vdwg.mxu0
    %v325 = vadd.f32 %v219, %v320
    %326 = vst [vmem:[#allocation2] sm:$0xff] %v325
    // Predicated region
    $region42: #{tpu_custom_call.1} parent=1 // pred_check
      _
    $region43: #{tpu_custom_call.1} parent=1 // pred_check_branch
      %328 = sbr.rel (%p63) target = $region45
    $region44: #{tpu_custom_call.1} parent=1 // pred_region
      %v329 = vld [vmem:[#allocation2] sm:$0xff]
      %330 = vst [vmem:[#allocation9] sm:$0xff] %v329
    $region45: #{tpu_custom_call.1} parent=1 // pred_fallthru
      _
    // Predicated region
    $region46: #{tpu_custom_call.1} parent=1 // pred_check
      _
    $region47: #{tpu_custom_call.1} parent=1 // pred_check_branch
      %332 = sbr.rel (0) target = $region49
    $region48: #{tpu_custom_call.1} parent=1 // pred_region
      %s334 = ssub.s32 128, 128
      %335 = vsyncadd [#allocation5], %s334
      %s337 = sshll.u32 [#allocation9], 4
      %s338 = int_to_ptr.vmem [resolvable:$true] %s337
      %340 = dma.vmem_to_hbm [thread:$0]  %s338, 128, %s5, [#allocation5]
    $region49: #{tpu_custom_call.1} parent=1 // pred_fallthru
      _
    // Predicated region
    $region50: #{tpu_custom_call.1} parent=1 // pred_check
      _
    $region51: #{tpu_custom_call.1} parent=1 // pred_check_branch
      %342 = sbr.rel (0) target = $region53
    $region52: #{tpu_custom_call.1} parent=1 // pred_region
      %343 = dma.done [#allocation5], 128
    $region53: #{tpu_custom_call.1} parent=1 // pred_fallthru
      _
    %344 = vsyncpa [#allocation4], 1
    %345 = vsyncpa [#allocation7], 1
    %346 = vsyncpa [#allocation5], 1

</llo_original>
